<compile_context>
chip_gen: v7x
topology: tpu7x:2x2x1
jax: 0.10.0
libtpu: 0.0.40
codegen_flags: <defaults>
</compile_context>

<pallas_src>
import functools

import jax
import jax.numpy as jnp
from jax.experimental import pallas as pl
from jax.experimental.pallas import tpu as pltpu


def _round_up(x, m):
    return (x + m - 1) // m * m


def _dbn_fused_kernel(n_layers, x_ref, *refs):
    """Fused stack of RBM v_to_h steps for one batch tile.

    refs = (W_0..W_{L-1}, b_0..b_{L-1}, u_0..u_{L-1}, ph_out, h_out)
    """
    w_refs = refs[:n_layers]
    b_refs = refs[n_layers:2 * n_layers]
    u_refs = refs[2 * n_layers:3 * n_layers]
    ph_ref = refs[3 * n_layers]
    h_ref = refs[3 * n_layers + 1]

    h = x_ref[...]                                     # (TILE_B, n_in_pad) f32
    p_h = None
    for i in range(n_layers):
        w = w_refs[i][...]                             # (n_in_pad, n_h_pad)
        b = b_refs[i][...]                             # (1, n_h_pad)
        logits = jnp.dot(h.astype(w.dtype), w,
                         preferred_element_type=jnp.float32) + b
        p_h = jax.nn.sigmoid(logits)
        # Bernoulli sample: h = 1{u < p_h},  u ~ U[0, 1)
        h = (u_refs[i][...] < p_h).astype(jnp.float32)

    # Only the top RBM's probabilities / samples leave the chip.
    ph_ref[...] = p_h
    h_ref[...] = h


def dbn_forward(x, weights, biases, key, *, tile_b=None,
                matmul_dtype=jnp.float32, return_uniforms=False):
    """DBN.forward: fused stack of RBM v_to_h passes. Returns (p_h, h) of top RBM.

    matmul_dtype: set to jnp.bfloat16 on v6e/v7x for MXU throughput
    (accumulation stays float32).
    """
    x = jnp.asarray(x, jnp.float32)
    x = x.reshape((x.shape[0], -1))                    # h.view((h.shape[0], -1))
    batch, n_vis = x.shape
    n_layers = len(weights)
    n_hiddens = [int(w.shape[1]) for w in weights]

    # Lane-dense padding: 128 on the lane (last) axis, 8 on the sublane axis.
    n_in_pad = [_round_up(n_vis, 128)] + [_round_up(nh, 128) for nh in n_hiddens[:-1]]
    n_h_pad = [_round_up(nh, 128) for nh in n_hiddens]

    if tile_b is None:
        tile_b = min(_round_up(batch, 8), 256)
    b_pad = _round_up(batch, tile_b)
    grid = (b_pad // tile_b,)

    # Zero-padded input; padded feature columns hit zero rows of W_0.
    x_p = jnp.zeros((b_pad, n_in_pad[0]), jnp.float32).at[:batch, :n_vis].set(x)

    w_p, b_p, u_p = [], [], []
    n_in = n_vis
    for i, (w, b) in enumerate(zip(weights, biases)):
        wi = jnp.zeros((n_in_pad[i], n_h_pad[i]), jnp.float32)
        wi = wi.at[:n_in, :n_hiddens[i]].set(jnp.asarray(w, jnp.float32))
        bi = jnp.zeros((1, n_h_pad[i]), jnp.float32)
        bi = bi.at[0, :n_hiddens[i]].set(jnp.asarray(b, jnp.float32).reshape(-1))
        key, ku = jax.random.split(key)
        ui = jax.random.uniform(ku, (b_pad, n_h_pad[i]), jnp.float32)
        w_p.append(wi.astype(matmul_dtype))
        b_p.append(bi)
        u_p.append(ui)
        n_in = n_hiddens[i]

    kernel = functools.partial(_dbn_fused_kernel, n_layers)

    in_specs = [pl.BlockSpec((tile_b, n_in_pad[0]), lambda g: (g, 0))]      # x tile
    in_specs += [pl.BlockSpec(w.shape, lambda g: (0, 0)) for w in w_p]      # W_i (resident)
    in_specs += [pl.BlockSpec(b.shape, lambda g: (0, 0)) for b in b_p]      # hb_i (resident)
    in_specs += [pl.BlockSpec((tile_b, npad), lambda g: (g, 0)) for npad in n_h_pad]  # u_i tiles

    out_specs = (
        pl.BlockSpec((tile_b, n_h_pad[-1]), lambda g: (g, 0)),   # p_h (top layer)
        pl.BlockSpec((tile_b, n_h_pad[-1]), lambda g: (g, 0)),   # h   (top layer)
    )

    ph_pad, h_pad = pl.pallas_call(
        kernel,
        grid=grid,
        in_specs=in_specs,
        out_specs=out_specs,
        out_shape=(
            jax.ShapeDtypeStruct((b_pad, n_h_pad[-1]), jnp.float32),
            jax.ShapeDtypeStruct((b_pad, n_h_pad[-1]), jnp.float32),
        ),
        compiler_params=pltpu.CompilerParams(
            dimension_semantics=("parallel",),
        ),
    )(x_p, *w_p, *b_p, *u_p)

    p_h = ph_pad[:batch, :n_hiddens[-1]]
    h = h_pad[:batch, :n_hiddens[-1]]

    if return_uniforms:
        # Valid-region uniforms, so a pure-JAX reference can reproduce the
        # exact same Bernoulli draws.
        u_valid = [u[:batch, :nh] for u, nh in zip(u_p, n_hiddens)]
        return p_h, h, u_valid
    return p_h, h


def init_dbn_params(key, n_visible, n_hiddens):
    """Deterministic synthetic RBM parameters: W_i (n_in, n_hid), hb_i (n_hid,)."""
    weights, biases = [], []
    n_in = n_visible
    for n_hid in n_hiddens:
        key, kw = jax.random.split(key)
        weights.append(0.1 * jax.random.normal(kw, (n_in, n_hid), dtype=jnp.float32))
        biases.append(jnp.zeros((n_hid,), dtype=jnp.float32))
        n_in = n_hid
    return weights, biases


if __name__ == "__main__":
    key = jax.random.PRNGKey(0)
    key, kx, kp, ks = jax.random.split(key, 4)

    batch = 8
    n_visible = 32
    n_hiddens = [64, 32, 16]

    x = jax.random.normal(kx, (batch, n_visible), dtype=jnp.float32)
    weights, biases = init_dbn_params(kp, n_visible, n_hiddens)

    p_h, h, uniforms = dbn_forward(x, weights, biases, ks, return_uniforms=True)
    jax.block_until_ready((p_h, h))

    # Pure-JAX reference with identical Bernoulli draws.
    h_ref = x
    p_ref = None
    for w, b, u in zip(weights, biases, uniforms):
        p_ref = jax.nn.sigmoid(h_ref @ w + b)
        h_ref = (u < p_ref).astype(jnp.float32)

    assert p_h.shape == (batch, n_hiddens[-1])
    assert h.shape == (batch, n_hiddens[-1])
    assert bool(jnp.all((p_h >= 0.0) & (p_h <= 1.0)))
    assert bool(jnp.all((h == 0.0) | (h == 1.0)))
    assert bool(jnp.allclose(p_h, p_ref, atol=1e-5, rtol=1e-5))
    # Sampling decisions match except (at most) float-rounding knife edges.
    assert float(jnp.mean((h == h_ref).astype(jnp.float32))) >= 0.99

    print("KERNEL_OK")
</pallas_src>

<mosaic_0001>
module attributes {stable_mosaic.version = 11 : i64} {
  func.func @_dbn_fused_kernel(%arg0: i32, %arg1: memref<8x128xf32, #tpu.memory_space<vmem>>, %arg2: memref<128x128xf32, #tpu.memory_space<vmem>>, %arg3: memref<128x128xf32, #tpu.memory_space<vmem>>, %arg4: memref<128x128xf32, #tpu.memory_space<vmem>>, %arg5: memref<1x128xf32, #tpu.memory_space<vmem>>, %arg6: memref<1x128xf32, #tpu.memory_space<vmem>>, %arg7: memref<1x128xf32, #tpu.memory_space<vmem>>, %arg8: memref<8x128xf32, #tpu.memory_space<vmem>>, %arg9: memref<8x128xf32, #tpu.memory_space<vmem>>, %arg10: memref<8x128xf32, #tpu.memory_space<vmem>>, %arg11: memref<8x128xf32, #tpu.memory_space<vmem>>, %arg12: memref<8x128xf32, #tpu.memory_space<vmem>>) attributes {dimension_semantics = [#tpu.dimension_semantics<parallel>], iteration_bounds = array<i64: 1>, scalar_prefetch = 0 : i64, scratch_operands = 0 : i64, tpu.core_type = #tpu.core_type<tc>, window_params = [{transform_indices = @transform_0, window_bounds = array<i64: 8, 128>}, {pipeline_mode = #tpu.pipeline_mode<synchronous>, transform_indices = @transform_1, window_bounds = array<i64: 128, 128>}, {pipeline_mode = #tpu.pipeline_mode<synchronous>, transform_indices = @transform_2, window_bounds = array<i64: 128, 128>}, {pipeline_mode = #tpu.pipeline_mode<synchronous>, transform_indices = @transform_3, window_bounds = array<i64: 128, 128>}, {pipeline_mode = #tpu.pipeline_mode<synchronous>, transform_indices = @transform_4, window_bounds = array<i64: 1, 128>}, {pipeline_mode = #tpu.pipeline_mode<synchronous>, transform_indices = @transform_5, window_bounds = array<i64: 1, 128>}, {pipeline_mode = #tpu.pipeline_mode<synchronous>, transform_indices = @transform_6, window_bounds = array<i64: 1, 128>}, {transform_indices = @transform_7, window_bounds = array<i64: 8, 128>}, {transform_indices = @transform_8, window_bounds = array<i64: 8, 128>}, {transform_indices = @transform_9, window_bounds = array<i64: 8, 128>}, {transform_indices = @transform_10, window_bounds = array<i64: 8, 128>}, {transform_indices = @transform_11, window_bounds = array<i64: 8, 128>}]} {
    %c0 = arith.constant 0 : index
    %c0_0 = arith.constant 0 : index
    %0 = vector.load %arg1[%c0, %c0_0] : memref<8x128xf32, #tpu.memory_space<vmem>>, vector<8x128xf32>
    %c0_1 = arith.constant 0 : index
    %c0_2 = arith.constant 0 : index
    %1 = vector.load %arg2[%c0_1, %c0_2] : memref<128x128xf32, #tpu.memory_space<vmem>>, vector<128x128xf32>
    %c0_3 = arith.constant 0 : index
    %c0_4 = arith.constant 0 : index
    %2 = vector.load %arg5[%c0_3, %c0_4] : memref<1x128xf32, #tpu.memory_space<vmem>>, vector<1x128xf32>
    %cst = arith.constant dense<0.000000e+00> : vector<8x128xf32>
    %3 = tpu.matmul %0, %1, %cst {dimension_numbers = #tpu.dot_dimension_numbers<[1], [0], [0], [1], [0, 0, 1, 1], [], []>} : vector<8x128xf32>, vector<128x128xf32>, vector<8x128xf32> -> vector<8x128xf32>
    %4 = vector.broadcast %2 : vector<1x128xf32> to vector<8x128xf32>
    %5 = arith.addf %3, %4 : vector<8x128xf32>
    %6 = arith.negf %5 : vector<8x128xf32>
    %7 = math.exp %6 : vector<8x128xf32>
    %cst_5 = arith.constant 1.000000e+00 : f32
    %8 = vector.broadcast %cst_5 : f32 to vector<8x128xf32>
    %9 = arith.addf %8, %7 : vector<8x128xf32>
    %10 = arith.divf %8, %9 : vector<8x128xf32>
    %c0_6 = arith.constant 0 : index
    %c0_7 = arith.constant 0 : index
    %11 = vector.load %arg8[%c0_6, %c0_7] : memref<8x128xf32, #tpu.memory_space<vmem>>, vector<8x128xf32>
    %12 = arith.cmpf olt, %11, %10 : vector<8x128xf32>
    %13 = arith.extui %12 : vector<8x128xi1> to vector<8x128xi32>
    %14 = arith.sitofp %13 : vector<8x128xi32> to vector<8x128xf32>
    %c0_8 = arith.constant 0 : index
    %c0_9 = arith.constant 0 : index
    %15 = vector.load %arg3[%c0_8, %c0_9] : memref<128x128xf32, #tpu.memory_space<vmem>>, vector<128x128xf32>
    %c0_10 = arith.constant 0 : index
    %c0_11 = arith.constant 0 : index
    %16 = vector.load %arg6[%c0_10, %c0_11] : memref<1x128xf32, #tpu.memory_space<vmem>>, vector<1x128xf32>
    %cst_12 = arith.constant dense<0.000000e+00> : vector<8x128xf32>
    %17 = tpu.matmul %14, %15, %cst_12 {dimension_numbers = #tpu.dot_dimension_numbers<[1], [0], [0], [1], [0, 0, 1, 1], [], []>} : vector<8x128xf32>, vector<128x128xf32>, vector<8x128xf32> -> vector<8x128xf32>
    %18 = vector.broadcast %16 : vector<1x128xf32> to vector<8x128xf32>
    %19 = arith.addf %17, %18 : vector<8x128xf32>
    %20 = arith.negf %19 : vector<8x128xf32>
    %21 = math.exp %20 : vector<8x128xf32>
    %cst_13 = arith.constant 1.000000e+00 : f32
    %22 = vector.broadcast %cst_13 : f32 to vector<8x128xf32>
    %23 = arith.addf %22, %21 : vector<8x128xf32>
    %24 = arith.divf %22, %23 : vector<8x128xf32>
    %c0_14 = arith.constant 0 : index
    %c0_15 = arith.constant 0 : index
    %25 = vector.load %arg9[%c0_14, %c0_15] : memref<8x128xf32, #tpu.memory_space<vmem>>, vector<8x128xf32>
    %26 = arith.cmpf olt, %25, %24 : vector<8x128xf32>
    %27 = arith.extui %26 : vector<8x128xi1> to vector<8x128xi32>
    %28 = arith.sitofp %27 : vector<8x128xi32> to vector<8x128xf32>
    %c0_16 = arith.constant 0 : index
    %c0_17 = arith.constant 0 : index
    %29 = vector.load %arg4[%c0_16, %c0_17] : memref<128x128xf32, #tpu.memory_space<vmem>>, vector<128x128xf32>
    %c0_18 = arith.constant 0 : index
    %c0_19 = arith.constant 0 : index
    %30 = vector.load %arg7[%c0_18, %c0_19] : memref<1x128xf32, #tpu.memory_space<vmem>>, vector<1x128xf32>
    %cst_20 = arith.constant dense<0.000000e+00> : vector<8x128xf32>
    %31 = tpu.matmul %28, %29, %cst_20 {dimension_numbers = #tpu.dot_dimension_numbers<[1], [0], [0], [1], [0, 0, 1, 1], [], []>} : vector<8x128xf32>, vector<128x128xf32>, vector<8x128xf32> -> vector<8x128xf32>
    %32 = vector.broadcast %30 : vector<1x128xf32> to vector<8x128xf32>
    %33 = arith.addf %31, %32 : vector<8x128xf32>
    %34 = arith.negf %33 : vector<8x128xf32>
    %35 = math.exp %34 : vector<8x128xf32>
    %cst_21 = arith.constant 1.000000e+00 : f32
    %36 = vector.broadcast %cst_21 : f32 to vector<8x128xf32>
    %37 = arith.addf %36, %35 : vector<8x128xf32>
    %38 = arith.divf %36, %37 : vector<8x128xf32>
    %c0_22 = arith.constant 0 : index
    %c0_23 = arith.constant 0 : index
    %39 = vector.load %arg10[%c0_22, %c0_23] : memref<8x128xf32, #tpu.memory_space<vmem>>, vector<8x128xf32>
    %40 = arith.cmpf olt, %39, %38 : vector<8x128xf32>
    %41 = arith.extui %40 : vector<8x128xi1> to vector<8x128xi32>
    %42 = arith.sitofp %41 : vector<8x128xi32> to vector<8x128xf32>
    %c0_24 = arith.constant 0 : index
    %c0_25 = arith.constant 0 : index
    %43 = vector.load %arg11[%c0_24, %c0_25] : memref<8x128xf32, #tpu.memory_space<vmem>>, vector<8x128xf32>
    tpu.vector_store %arg11[%c0_24, %c0_25], %38 {strides = array<i32>} : memref<8x128xf32, #tpu.memory_space<vmem>>, vector<8x128xf32>,
    %c0_26 = arith.constant 0 : index
    %c0_27 = arith.constant 0 : index
    %44 = vector.load %arg12[%c0_26, %c0_27] : memref<8x128xf32, #tpu.memory_space<vmem>>, vector<8x128xf32>
    tpu.vector_store %arg12[%c0_26, %c0_27], %42 {strides = array<i32>} : memref<8x128xf32, #tpu.memory_space<vmem>>, vector<8x128xf32>,
    return
  }
  func.func @transform_0(%arg0: i32) -> (i32, i32) {
    %c0_i32 = arith.constant 0 : i32
    %c0_i32_0 = arith.constant 0 : i32
    return %arg0, %c0_i32 : i32, i32
  }
  func.func @transform_1(%arg0: i32) -> (i32, i32) {
    %c0_i32 = arith.constant 0 : i32
    %c0_i32_0 = arith.constant 0 : i32
    %c0_i32_1 = arith.constant 0 : i32
    return %c0_i32, %c0_i32_0 : i32, i32
  }
  func.func @transform_2(%arg0: i32) -> (i32, i32) {
    %c0_i32 = arith.constant 0 : i32
    %c0_i32_0 = arith.constant 0 : i32
    %c0_i32_1 = arith.constant 0 : i32
    return %c0_i32, %c0_i32_0 : i32, i32
  }
  func.func @transform_3(%arg0: i32) -> (i32, i32) {
    %c0_i32 = arith.constant 0 : i32
    %c0_i32_0 = arith.constant 0 : i32
    %c0_i32_1 = arith.constant 0 : i32
    return %c0_i32, %c0_i32_0 : i32, i32
  }
  func.func @transform_4(%arg0: i32) -> (i32, i32) {
    %c0_i32 = arith.constant 0 : i32
    %c0_i32_0 = arith.constant 0 : i32
    %c0_i32_1 = arith.constant 0 : i32
    return %c0_i32, %c0_i32_0 : i32, i32
  }
  func.func @transform_5(%arg0: i32) -> (i32, i32) {
    %c0_i32 = arith.constant 0 : i32
    %c0_i32_0 = arith.constant 0 : i32
    %c0_i32_1 = arith.constant 0 : i32
    return %c0_i32, %c0_i32_0 : i32, i32
  }
  func.func @transform_6(%arg0: i32) -> (i32, i32) {
    %c0_i32 = arith.constant 0 : i32
    %c0_i32_0 = arith.constant 0 : i32
    %c0_i32_1 = arith.constant 0 : i32
    return %c0_i32, %c0_i32_0 : i32, i32
  }
  func.func @transform_7(%arg0: i32) -> (i32, i32) {
    %c0_i32 = arith.constant 0 : i32
    %c0_i32_0 = arith.constant 0 : i32
    return %arg0, %c0_i32 : i32, i32
  }
  func.func @transform_8(%arg0: i32) -> (i32, i32) {
    %c0_i32 = arith.constant 0 : i32
    %c0_i32_0 = arith.constant 0 : i32
    return %arg0, %c0_i32 : i32, i32
  }
  func.func @transform_9(%arg0: i32) -> (i32, i32) {
    %c0_i32 = arith.constant 0 : i32
    %c0_i32_0 = arith.constant 0 : i32
    return %arg0, %c0_i32 : i32, i32
  }
  func.func @transform_10(%arg0: i32) -> (i32, i32) {
    %c0_i32 = arith.constant 0 : i32
    %c0_i32_0 = arith.constant 0 : i32
    return %arg0, %c0_i32 : i32, i32
  }
  func.func @transform_11(%arg0: i32) -> (i32, i32) {
    %c0_i32 = arith.constant 0 : i32
    %c0_i32_0 = arith.constant 0 : i32
    return %arg0, %c0_i32 : i32, i32
  }
}

</mosaic_0001>

<llo_original>
// kernel: tpu_custom_call.1
$region0: #{tpu_custom_call.1}
  #allocation0 [shape = 'u32[]', space=smem, size = 0x4, offset = 0x4, fixed_abs, tag = 'smem constant byte address 0x4 - core index']
  #allocation1 [shape = 'u32[144,128]{1,0:T(1,128)}', space=vmem, size = 0x12000, scoped, tag = 'internal scratch']
  %s0 = inlined_call_operand.hbm [shape: f32[8,128], index: 0, kind: input, shape index: {}]
  %s1 = inlined_call_operand.hbm [shape: f32[128,128], index: 1, kind: input, shape index: {}]
  %s2 = inlined_call_operand.hbm [shape: f32[128,128], index: 2, kind: input, shape index: {}]
  %s3 = inlined_call_operand.hbm [shape: f32[128,128], index: 3, kind: input, shape index: {}]
  %s4 = inlined_call_operand.vmem [shape: f32[1,128], index: 4, kind: input, shape index: {}]
  %s5 = inlined_call_operand.vmem [shape: f32[1,128], index: 5, kind: input, shape index: {}]
  %s6 = inlined_call_operand.hbm [shape: f32[1,128], index: 6, kind: input, shape index: {}]
  %s7 = inlined_call_operand.vmem [shape: f32[8,128], index: 7, kind: input, shape index: {}]
  %s8 = inlined_call_operand.vmem [shape: f32[8,128], index: 8, kind: input, shape index: {}]
  %s9 = inlined_call_operand.vmem [shape: f32[8,128], index: 9, kind: input, shape index: {}]
  %s10 = inlined_call_operand.hbm [shape: f32[8,128], index: 10, kind: output, shape index: {0}]
  %s11 = inlined_call_operand.hbm [shape: f32[8,128], index: 11, kind: output, shape index: {1}]
  %12 = xla_tuple %s10, %s11
  %s13 = sld [smem:[#allocation0]]
  $region78: #{tpu_custom_call.1} parent=0
    _
  %s15 = ssub.s32 1, %s13
  %s16 = scalar_select 0, %s15, %s13
  $region1: #{tpu_custom_call.1} parent=0
    #allocation2 [shape = 'u8[4096]{0}', space=vmem, size = 0x1000, scoped, tag = 'input window, operand 0, single buffered']
    #allocation3 [shape = 's32[1]{0}', space=sflag, size = 0x4, scoped, tag = 'scoped memory for tpu_custom_call.1']
    #allocation4 [shape = 's32[1]{0}', space=sflag, size = 0x4, scoped, tag = 'scoped memory for tpu_custom_call.1']
    #allocation5 [shape = 'u8[65536]{0}', space=vmem, size = 0x10000, scoped, tag = 'input window, operand 1, single buffered']
    #allocation6 [shape = 's32[1]{0}', space=sflag, size = 0x4, scoped, tag = 'scoped memory for tpu_custom_call.1']
    #allocation7 [shape = 'u8[65536]{0}', space=vmem, size = 0x10000, scoped, tag = 'input window, operand 2, single buffered']
    #allocation8 [shape = 'u8[65536]{0}', space=vmem, size = 0x10000, scoped, tag = 'input window, operand 3, single buffered']
    #allocation9 [shape = 's32[1]{0}', space=sflag, size = 0x4, scoped, tag = 'scoped memory for tpu_custom_call.1']
    #allocation10 [shape = 'u8[512]{0}', space=vmem, size = 0x400, scoped, tag = 'input window, operand 6, single buffered']
    #allocation11 [shape = 'u8[4096]{0}', space=vmem, size = 0x1000, scoped, tag = 'output window, operand 0, single buffered']
    #allocation12 [shape = 'u8[4096]{0}', space=vmem, size = 0x1000, scoped, tag = 'output window, operand 1, single buffered']
    #allocation13 [shape = 's32[1]{0}', space=sflag, size = 0x4, scoped, tag = 'scoped memory for tpu_custom_call.1']
    %17 = vsyncpa [#allocation3], 0
    %18 = vsyncpa [#allocation6], 0
    %19 = vsyncpa [#allocation9], 0
    %20 = vsyncpa [#allocation4], 0
    %21 = vsyncpa [#allocation13], 0
    // Predicated region
    $region2: #{tpu_custom_call.1} parent=1 // pred_check
      _
    $region3: #{tpu_custom_call.1} parent=1 // pred_check_branch
      %23 = sbr.rel (0) target = $region5
    $region4: #{tpu_custom_call.1} parent=1 // pred_region
      %s25 = ssub.s32 128, 128
      %26 = vsyncadd [#allocation3], %s25
      %s28 = sshll.u32 [#allocation2], 4
      %s29 = int_to_ptr.vmem [resolvable:$true] %s28
      %31 = dma.hbm_to_vmem [thread:$0]  %s0, 128, %s29, [#allocation3]
    $region5: #{tpu_custom_call.1} parent=1 // pred_fallthru
      _
    // Predicated region
    $region6: #{tpu_custom_call.1} parent=1 // pred_check
      _
    $region7: #{tpu_custom_call.1} parent=1 // pred_check_branch
      %33 = sbr.rel (0) target = $region9
    $region8: #{tpu_custom_call.1} parent=1 // pred_region
      %s35 = ssub.s32 2048, 2048
      %36 = vsyncadd [#allocation6], %s35
      %s37 = sshll.u32 [#allocation5], 4
      %s38 = int_to_ptr.vmem [resolvable:$true] %s37
      %43 = dma.hbm_to_vmem [thread:$0]  %s1, 2048, %s38, [#allocation6], 128, 128, 8
    $region9: #{tpu_custom_call.1} parent=1 // pred_fallthru
      _
    // Predicated region
    $region10: #{tpu_custom_call.1} parent=1 // pred_check
      _
    $region11: #{tpu_custom_call.1} parent=1 // pred_check_branch
      %45 = sbr.rel (0) target = $region13
    $region12: #{tpu_custom_call.1} parent=1 // pred_region
      %s47 = ssub.s32 2048, 2048
      %48 = vsyncadd [#allocation6], %s47
      %s49 = sshll.u32 [#allocation7], 4
      %s50 = int_to_ptr.vmem [resolvable:$true] %s49
      %55 = dma.hbm_to_vmem [thread:$0]  %s2, 2048, %s50, [#allocation6], 128, 128, 8
    $region13: #{tpu_custom_call.1} parent=1 // pred_fallthru
      _
    // Predicated region
    $region14: #{tpu_custom_call.1} parent=1 // pred_check
      _
    $region15: #{tpu_custom_call.1} parent=1 // pred_check_branch
      %57 = sbr.rel (0) target = $region17
    $region16: #{tpu_custom_call.1} parent=1 // pred_region
      %s59 = ssub.s32 2048, 2048
      %60 = vsyncadd [#allocation9], %s59
      %s61 = sshll.u32 [#allocation8], 4
      %s62 = int_to_ptr.vmem [resolvable:$true] %s61
      %67 = dma.hbm_to_vmem [thread:$0]  %s3, 2048, %s62, [#allocation9], 128, 128, 8
    $region17: #{tpu_custom_call.1} parent=1 // pred_fallthru
      _
    // Predicated region
    $region18: #{tpu_custom_call.1} parent=1 // pred_check
      _
    $region19: #{tpu_custom_call.1} parent=1 // pred_check_branch
      %69 = sbr.rel (0) target = $region21
    $region20: #{tpu_custom_call.1} parent=1 // pred_region
      _
    $region21: #{tpu_custom_call.1} parent=1 // pred_fallthru
      _
    // Predicated region
    $region22: #{tpu_custom_call.1} parent=1 // pred_check
      _
    $region23: #{tpu_custom_call.1} parent=1 // pred_check_branch
      %71 = sbr.rel (0) target = $region25
    $region24: #{tpu_custom_call.1} parent=1 // pred_region
      _
    $region25: #{tpu_custom_call.1} parent=1 // pred_fallthru
      _
    // Predicated region
    $region26: #{tpu_custom_call.1} parent=1 // pred_check
      _
    $region27: #{tpu_custom_call.1} parent=1 // pred_check_branch
      %73 = sbr.rel (0) target = $region29
    $region28: #{tpu_custom_call.1} parent=1 // pred_region
      %s75 = ssub.s32 16, 16
      %76 = vsyncadd [#allocation9], %s75
      %s78 = sshll.u32 [#allocation10], 4
      %s79 = int_to_ptr.vmem [resolvable:$true] %s78
      %81 = dma.hbm_to_vmem [thread:$0]  %s6, 16, %s79, [#allocation9]
    $region29: #{tpu_custom_call.1} parent=1 // pred_fallthru
      _
    // Predicated region
    $region30: #{tpu_custom_call.1} parent=1 // pred_check
      _
    $region31: #{tpu_custom_call.1} parent=1 // pred_check_branch
      %83 = sbr.rel (0) target = $region33
    $region32: #{tpu_custom_call.1} parent=1 // pred_region
      _
    $region33: #{tpu_custom_call.1} parent=1 // pred_fallthru
      _
    // Predicated region
    $region34: #{tpu_custom_call.1} parent=1 // pred_check
      _
    $region35: #{tpu_custom_call.1} parent=1 // pred_check_branch
      %85 = sbr.rel (0) target = $region37
    $region36: #{tpu_custom_call.1} parent=1 // pred_region
      _
    $region37: #{tpu_custom_call.1} parent=1 // pred_fallthru
      _
    // Predicated region
    $region38: #{tpu_custom_call.1} parent=1 // pred_check
      _
    $region39: #{tpu_custom_call.1} parent=1 // pred_check_branch
      %87 = sbr.rel (0) target = $region41
    $region40: #{tpu_custom_call.1} parent=1 // pred_region
      _
    $region41: #{tpu_custom_call.1} parent=1 // pred_fallthru
      _
    // Predicated region
    $region42: #{tpu_custom_call.1} parent=1 // pred_check
      _
    $region43: #{tpu_custom_call.1} parent=1 // pred_check_branch
      %89 = sbr.rel (0) target = $region45
    $region44: #{tpu_custom_call.1} parent=1 // pred_region
      %90 = dma.done [#allocation3], 128
    $region45: #{tpu_custom_call.1} parent=1 // pred_fallthru
      _
    // Predicated region
    $region46: #{tpu_custom_call.1} parent=1 // pred_check
      _
    $region47: #{tpu_custom_call.1} parent=1 // pred_check_branch
      %92 = sbr.rel (0) target = $region49
    $region48: #{tpu_custom_call.1} parent=1 // pred_region
      %93 = dma.done [#allocation6], 2048
    $region49: #{tpu_custom_call.1} parent=1 // pred_fallthru
      _
    // Predicated region
    $region50: #{tpu_custom_call.1} parent=1 // pred_check
      _
    $region51: #{tpu_custom_call.1} parent=1 // pred_check_branch
      %95 = sbr.rel (0) target = $region53
    $region52: #{tpu_custom_call.1} parent=1 // pred_region
      %96 = dma.done [#allocation6], 2048
    $region53: #{tpu_custom_call.1} parent=1 // pred_fallthru
      _
    // Predicated region
    $region54: #{tpu_custom_call.1} parent=1 // pred_check
      _
    $region55: #{tpu_custom_call.1} parent=1 // pred_check_branch
      %98 = sbr.rel (0) target = $region57
    $region56: #{tpu_custom_call.1} parent=1 // pred_region
      %99 = dma.done [#allocation9], 2048
    $region57: #{tpu_custom_call.1} parent=1 // pred_fallthru
      _
    // Predicated region
    $region58: #{tpu_custom_call.1} parent=1 // pred_check
      _
    $region59: #{tpu_custom_call.1} parent=1 // pred_check_branch
      %101 = sbr.rel (0) target = $region61
    $region60: #{tpu_custom_call.1} parent=1 // pred_region
      %102 = dma.done [#allocation9], 16
    $region61: #{tpu_custom_call.1} parent=1 // pred_fallthru
      _
    %v103 = vld [vmem:[#allocation2] sm:$0xff]
    %v104 = vld [vmem:[#allocation5] sm:$0xff]
    %v105 = vld [vmem:[#allocation5 + $0x8] sm:$0xff]
    %v106 = vld [vmem:[#allocation5 + $0x10] sm:$0xff]
    %v107 = vld [vmem:[#allocation5 + $0x18] sm:$0xff]
    %v108 = vld [vmem:[#allocation5 + $0x20] sm:$0xff]
    %v109 = vld [vmem:[#allocation5 + $0x28] sm:$0xff]
    %v110 = vld [vmem:[#allocation5 + $0x30] sm:$0xff]
    %v111 = vld [vmem:[#allocation5 + $0x38] sm:$0xff]
    %v112 = vld [vmem:[#allocation5 + $0x40] sm:$0xff]
    %v113 = vld [vmem:[#allocation5 + $0x48] sm:$0xff]
    %v114 = vld [vmem:[#allocation5 + $0x50] sm:$0xff]
    %v115 = vld [vmem:[#allocation5 + $0x58] sm:$0xff]
    %v116 = vld [vmem:[#allocation5 + $0x60] sm:$0xff]
    %v117 = vld [vmem:[#allocation5 + $0x68] sm:$0xff]
    %v118 = vld [vmem:[#allocation5 + $0x70] sm:$0xff]
    %v119 = vld [vmem:[#allocation5 + $0x78] sm:$0xff]
    %v120 = vld [vmem:[%s4] sm:$0x1]
    %v122 = vlaneseq
    %v123 = vshrl.u32 %v122, 7
    %v124 = vsub.s32 0, %v123
    %v125 = vrot.slane %v120, %v124
    %127 = vmatprep.subr.mxu0 0.0
    %128 = vmatpush1.msra.mxu0 %v104
    %129 = vmatprep.subr.mxu0 0.0
    %130 = vmatpush1.msra.mxu0 %v105
    %131 = vmatprep.subr.mxu0 0.0
    %132 = vmatpush1.msra.mxu0 %v106
    %133 = vmatprep.subr.mxu0 0.0
    %134 = vmatpush1.msra.mxu0 %v107
    %135 = vmatprep.subr.mxu0 0.0
    %136 = vmatpush1.msra.mxu0 %v108
    %137 = vmatprep.subr.mxu0 0.0
    %138 = vmatpush1.msra.mxu0 %v109
    %139 = vmatprep.subr.mxu0 0.0
    %140 = vmatpush1.msra.mxu0 %v110
    %141 = vmatprep.subr.mxu0 0.0
    %142 = vmatpush1.msra.mxu0 %v111
    %143 = vmatprep.subr.mxu0 0.0
    %144 = vmatpush1.msra.mxu0 %v112
    %145 = vmatprep.subr.mxu0 0.0
    %146 = vmatpush1.msra.mxu0 %v113
    %147 = vmatprep.subr.mxu0 0.0
    %148 = vmatpush1.msra.mxu0 %v114
    %149 = vmatprep.subr.mxu0 0.0
    %150 = vmatpush1.msra.mxu0 %v115
    %151 = vmatprep.subr.mxu0 0.0
    %152 = vmatpush1.msra.mxu0 %v116
    %153 = vmatprep.subr.mxu0 0.0
    %154 = vmatpush1.msra.mxu0 %v117
    %155 = vmatprep.subr.mxu0 0.0
    %156 = vmatpush1.msra.mxu0 %v118
    %157 = vmatprep.subr.mxu0 0.0
    %158 = vmatpush1.msra.mxu0 %v119
    %159 = vmatprep.subr.mxu0 0.0
    %160 = vmatpush1.msra.mxu0 0.0
    %161 = vmatprep.subr.mxu0 0.0
    %162 = vmatpush1.msra.mxu0 0.0
    %163 = vmatprep.subr.mxu0 0.0
    %164 = vmatpush1.msra.mxu0 0.0
    %165 = vmatprep.subr.mxu0 0.0
    %166 = vmatpush1.msra.mxu0 0.0
    %167 = vmatprep.subr.mxu0 0.0
    %168 = vmatpush1.msra.mxu0 0.0
    %169 = vmatprep.subr.mxu0 0.0
    %170 = vmatpush1.msra.mxu0 0.0
    %171 = vmatprep.subr.mxu0 0.0
    %172 = vmatpush1.msra.mxu0 0.0
    %173 = vmatprep.subr.mxu0 0.0
    %174 = vmatpush1.msra.mxu0 0.0
    %175 = vmatprep.subr.mxu0 0.0
    %176 = vmatpush1.msra.mxu0 0.0
    %177 = vmatprep.subr.mxu0 0.0
    %178 = vmatpush1.msra.mxu0 0.0
    %179 = vmatprep.subr.mxu0 0.0
    %180 = vmatpush1.msra.mxu0 0.0
    %181 = vmatprep.subr.mxu0 0.0
    %182 = vmatpush1.msra.mxu0 0.0
    %183 = vmatprep.subr.mxu0 0.0
    %184 = vmatpush1.msra.mxu0 0.0
    %185 = vmatprep.subr.mxu0 0.0
    %186 = vmatpush1.msra.mxu0 0.0
    %187 = vmatprep.subr.mxu0 0.0
    %188 = vmatpush1.msra.mxu0 0.0
    %189 = vmatprep.subr.mxu0 0.0
    %190 = vmatpush1.msra.mxu0 0.0
    %191 = vmatprep.mubr.f32.mxu0 0.0
    %192 = vmatmul.mubr.f32.gmra.mrb[0].mxu0 %v103
    %v193 = vpop.f32.mrb[0].mxu0
    %v194 = vadd.f32 %v125, %v193
    %v195 = vpop.f32.mrb[0].mxu0
    %196 = vdwg.mxu0
    %v197 = vxor.u32 %v194, 2147483648
    %v198 = vmul.f32 %v197, 1.442695
    %v199 = vpow.pop %v198
    %v200 = vadd.f32 %v199, 1.0
    %v201 = vrcp.pop %v200
    %v202 = vmul.f32 1.0, %v201
    %v203 = vld [vmem:[%s7] sm:$0xff]
    %vm204 = vcmp.lt.f32.partialorder %v203, %v202
    %v205 = vsel %vm204, 1, 0
    %v206 = vcvt.s32.f32 %v205
    %v207 = vld [vmem:[#allocation7] sm:$0xff]
    %v208 = vld [vmem:[#allocation7 + $0x8] sm:$0xff]
    %v209 = vld [vmem:[#allocation7 + $0x10] sm:$0xff]
    %v210 = vld [vmem:[#allocation7 + $0x18] sm:$0xff]
    %v211 = vld [vmem:[#allocation7 + $0x20] sm:$0xff]
    %v212 = vld [vmem:[#allocation7 + $0x28] sm:$0xff]
    %v213 = vld [vmem:[#allocation7 + $0x30] sm:$0xff]
    %v214 = vld [vmem:[#allocation7 + $0x38] sm:$0xff]
    %v215 = vld [vmem:[#allocation7 + $0x40] sm:$0xff]
    %v216 = vld [vmem:[#allocation7 + $0x48] sm:$0xff]
    %v217 = vld [vmem:[#allocation7 + $0x50] sm:$0xff]
    %v218 = vld [vmem:[#allocation7 + $0x58] sm:$0xff]
    %v219 = vld [vmem:[#allocation7 + $0x60] sm:$0xff]
    %v220 = vld [vmem:[#allocation7 + $0x68] sm:$0xff]
    %v221 = vld [vmem:[#allocation7 + $0x70] sm:$0xff]
    %v222 = vld [vmem:[#allocation7 + $0x78] sm:$0xff]
    %v223 = vld [vmem:[%s5] sm:$0x1]
    %v225 = vlaneseq
    %v226 = vshrl.u32 %v225, 7
    %v227 = vsub.s32 0, %v226
    %v228 = vrot.slane %v223, %v227
    %230 = vmatprep.subr.mxu0 0.0
    %231 = vmatpush1.msra.mxu0 %v207
    %232 = vmatprep.subr.mxu0 0.0
    %233 = vmatpush1.msra.mxu0 %v208
    %234 = vmatprep.subr.mxu0 0.0
    %235 = vmatpush1.msra.mxu0 %v209
    %236 = vmatprep.subr.mxu0 0.0
    %237 = vmatpush1.msra.mxu0 %v210
    %238 = vmatprep.subr.mxu0 0.0
    %239 = vmatpush1.msra.mxu0 %v211
    %240 = vmatprep.subr.mxu0 0.0
    %241 = vmatpush1.msra.mxu0 %v212
    %242 = vmatprep.subr.mxu0 0.0
    %243 = vmatpush1.msra.mxu0 %v213
    %244 = vmatprep.subr.mxu0 0.0
    %245 = vmatpush1.msra.mxu0 %v214
    %246 = vmatprep.subr.mxu0 0.0
    %247 = vmatpush1.msra.mxu0 %v215
    %248 = vmatprep.subr.mxu0 0.0
    %249 = vmatpush1.msra.mxu0 %v216
    %250 = vmatprep.subr.mxu0 0.0
    %251 = vmatpush1.msra.mxu0 %v217
    %252 = vmatprep.subr.mxu0 0.0
    %253 = vmatpush1.msra.mxu0 %v218
    %254 = vmatprep.subr.mxu0 0.0
    %255 = vmatpush1.msra.mxu0 %v219
    %256 = vmatprep.subr.mxu0 0.0
    %257 = vmatpush1.msra.mxu0 %v220
    %258 = vmatprep.subr.mxu0 0.0
    %259 = vmatpush1.msra.mxu0 %v221
    %260 = vmatprep.subr.mxu0 0.0
    %261 = vmatpush1.msra.mxu0 %v222
    %262 = vmatprep.subr.mxu0 0.0
    %263 = vmatpush1.msra.mxu0 0.0
    %264 = vmatprep.subr.mxu0 0.0
    %265 = vmatpush1.msra.mxu0 0.0
    %266 = vmatprep.subr.mxu0 0.0
    %267 = vmatpush1.msra.mxu0 0.0
    %268 = vmatprep.subr.mxu0 0.0
    %269 = vmatpush1.msra.mxu0 0.0
    %270 = vmatprep.subr.mxu0 0.0
    %271 = vmatpush1.msra.mxu0 0.0
    %272 = vmatprep.subr.mxu0 0.0
    %273 = vmatpush1.msra.mxu0 0.0
    %274 = vmatprep.subr.mxu0 0.0
    %275 = vmatpush1.msra.mxu0 0.0
    %276 = vmatprep.subr.mxu0 0.0
    %277 = vmatpush1.msra.mxu0 0.0
    %278 = vmatprep.subr.mxu0 0.0
    %279 = vmatpush1.msra.mxu0 0.0
    %280 = vmatprep.subr.mxu0 0.0
    %281 = vmatpush1.msra.mxu0 0.0
    %282 = vmatprep.subr.mxu0 0.0
    %283 = vmatpush1.msra.mxu0 0.0
    %284 = vmatprep.subr.mxu0 0.0
    %285 = vmatpush1.msra.mxu0 0.0
    %286 = vmatprep.subr.mxu0 0.0
    %287 = vmatpush1.msra.mxu0 0.0
    %288 = vmatprep.subr.mxu0 0.0
    %289 = vmatpush1.msra.mxu0 0.0
    %290 = vmatprep.subr.mxu0 0.0
    %291 = vmatpush1.msra.mxu0 0.0
    %292 = vmatprep.subr.mxu0 0.0
    %293 = vmatpush1.msra.mxu0 0.0
    %294 = vmatprep.mubr.f32.mxu0 0.0
    %295 = vmatmul.mubr.f32.gmra.mrb[0].mxu0 %v206
    %v296 = vpop.f32.mrb[0].mxu0
    %v297 = vadd.f32 %v228, %v296
    %v298 = vpop.f32.mrb[0].mxu0
    %299 = vdwg.mxu0
    %v300 = vxor.u32 %v297, 2147483648
    %v301 = vmul.f32 %v300, 1.442695
    %v302 = vpow.pop %v301
    %v303 = vadd.f32 %v302, 1.0
    %v304 = vrcp.pop %v303
    %v305 = vmul.f32 1.0, %v304
    %v306 = vld [vmem:[%s8] sm:$0xff]
    %vm307 = vcmp.lt.f32.partialorder %v306, %v305
    %v308 = vsel %vm307, 1, 0
    %v309 = vcvt.s32.f32 %v308
    %v310 = vld [vmem:[#allocation8] sm:$0xff]
    %v311 = vld [vmem:[#allocation8 + $0x8] sm:$0xff]
    %v312 = vld [vmem:[#allocation8 + $0x10] sm:$0xff]
    %v313 = vld [vmem:[#allocation8 + $0x18] sm:$0xff]
    %v314 = vld [vmem:[#allocation8 + $0x20] sm:$0xff]
    %v315 = vld [vmem:[#allocation8 + $0x28] sm:$0xff]
    %v316 = vld [vmem:[#allocation8 + $0x30] sm:$0xff]
    %v317 = vld [vmem:[#allocation8 + $0x38] sm:$0xff]
    %v318 = vld [vmem:[#allocation8 + $0x40] sm:$0xff]
    %v319 = vld [vmem:[#allocation8 + $0x48] sm:$0xff]
    %v320 = vld [vmem:[#allocation8 + $0x50] sm:$0xff]
    %v321 = vld [vmem:[#allocation8 + $0x58] sm:$0xff]
    %v322 = vld [vmem:[#allocation8 + $0x60] sm:$0xff]
    %v323 = vld [vmem:[#allocation8 + $0x68] sm:$0xff]
    %v324 = vld [vmem:[#allocation8 + $0x70] sm:$0xff]
    %v325 = vld [vmem:[#allocation8 + $0x78] sm:$0xff]
    %v326 = vld [vmem:[#allocation10] sm:$0x1]
    %v328 = vlaneseq
    %v329 = vshrl.u32 %v328, 7
    %v330 = vsub.s32 0, %v329
    %v331 = vrot.slane %v326, %v330
    %333 = vmatprep.subr.mxu0 0.0
    %334 = vmatpush1.msra.mxu0 %v310
    %335 = vmatprep.subr.mxu0 0.0
    %336 = vmatpush1.msra.mxu0 %v311
    %337 = vmatprep.subr.mxu0 0.0
    %338 = vmatpush1.msra.mxu0 %v312
    %339 = vmatprep.subr.mxu0 0.0
    %340 = vmatpush1.msra.mxu0 %v313
    %341 = vmatprep.subr.mxu0 0.0
    %342 = vmatpush1.msra.mxu0 %v314
    %343 = vmatprep.subr.mxu0 0.0
    %344 = vmatpush1.msra.mxu0 %v315
    %345 = vmatprep.subr.mxu0 0.0
    %346 = vmatpush1.msra.mxu0 %v316
    %347 = vmatprep.subr.mxu0 0.0
    %348 = vmatpush1.msra.mxu0 %v317
    %349 = vmatprep.subr.mxu0 0.0
    %350 = vmatpush1.msra.mxu0 %v318
    %351 = vmatprep.subr.mxu0 0.0
    %352 = vmatpush1.msra.mxu0 %v319
    %353 = vmatprep.subr.mxu0 0.0
    %354 = vmatpush1.msra.mxu0 %v320
    %355 = vmatprep.subr.mxu0 0.0
    %356 = vmatpush1.msra.mxu0 %v321
    %357 = vmatprep.subr.mxu0 0.0
    %358 = vmatpush1.msra.mxu0 %v322
    %359 = vmatprep.subr.mxu0 0.0
    %360 = vmatpush1.msra.mxu0 %v323
    %361 = vmatprep.subr.mxu0 0.0
    %362 = vmatpush1.msra.mxu0 %v324
    %363 = vmatprep.subr.mxu0 0.0
    %364 = vmatpush1.msra.mxu0 %v325
    %365 = vmatprep.subr.mxu0 0.0
    %366 = vmatpush1.msra.mxu0 0.0
    %367 = vmatprep.subr.mxu0 0.0
    %368 = vmatpush1.msra.mxu0 0.0
    %369 = vmatprep.subr.mxu0 0.0
    %370 = vmatpush1.msra.mxu0 0.0
    %371 = vmatprep.subr.mxu0 0.0
    %372 = vmatpush1.msra.mxu0 0.0
    %373 = vmatprep.subr.mxu0 0.0
    %374 = vmatpush1.msra.mxu0 0.0
    %375 = vmatprep.subr.mxu0 0.0
    %376 = vmatpush1.msra.mxu0 0.0
    %377 = vmatprep.subr.mxu0 0.0
    %378 = vmatpush1.msra.mxu0 0.0
    %379 = vmatprep.subr.mxu0 0.0
    %380 = vmatpush1.msra.mxu0 0.0
    %381 = vmatprep.subr.mxu0 0.0
    %382 = vmatpush1.msra.mxu0 0.0
    %383 = vmatprep.subr.mxu0 0.0
    %384 = vmatpush1.msra.mxu0 0.0
    %385 = vmatprep.subr.mxu0 0.0
    %386 = vmatpush1.msra.mxu0 0.0
    %387 = vmatprep.subr.mxu0 0.0
    %388 = vmatpush1.msra.mxu0 0.0
    %389 = vmatprep.subr.mxu0 0.0
    %390 = vmatpush1.msra.mxu0 0.0
    %391 = vmatprep.subr.mxu0 0.0
    %392 = vmatpush1.msra.mxu0 0.0
    %393 = vmatprep.subr.mxu0 0.0
    %394 = vmatpush1.msra.mxu0 0.0
    %395 = vmatprep.subr.mxu0 0.0
    %396 = vmatpush1.msra.mxu0 0.0
    %397 = vmatprep.mubr.f32.mxu0 0.0
    %398 = vmatmul.mubr.f32.gmra.mrb[0].mxu0 %v309
    %v399 = vpop.f32.mrb[0].mxu0
    %v400 = vadd.f32 %v331, %v399
    %v401 = vpop.f32.mrb[0].mxu0
    %402 = vdwg.mxu0
    %v403 = vxor.u32 %v400, 2147483648
    %v404 = vmul.f32 %v403, 1.442695
    %v405 = vpow.pop %v404
    %v406 = vadd.f32 %v405, 1.0
    %v407 = vrcp.pop %v406
    %v408 = vmul.f32 1.0, %v407
    %v409 = vld [vmem:[%s9] sm:$0xff]
    %vm410 = vcmp.lt.f32.partialorder %v409, %v408
    %v411 = vsel %vm410, 1, 0
    %v412 = vcvt.s32.f32 %v411
    %413 = vst [vmem:[#allocation11] sm:$0xff] %v408
    %414 = vst [vmem:[#allocation12] sm:$0xff] %v412
    // Predicated region
    $region62: #{tpu_custom_call.1} parent=1 // pred_check
      _
    $region63: #{tpu_custom_call.1} parent=1 // pred_check_branch
      %416 = sbr.rel (0) target = $region65
    $region64: #{tpu_custom_call.1} parent=1 // pred_region
      %s418 = ssub.s32 128, 128
      %419 = vsyncadd [#allocation4], %s418
      %s421 = sshll.u32 [#allocation11], 4
      %s422 = int_to_ptr.vmem [resolvable:$true] %s421
      %424 = dma.vmem_to_hbm [thread:$0]  %s422, 128, %s10, [#allocation4]
    $region65: #{tpu_custom_call.1} parent=1 // pred_fallthru
      _
    // Predicated region
    $region66: #{tpu_custom_call.1} parent=1 // pred_check
      _
    $region67: #{tpu_custom_call.1} parent=1 // pred_check_branch
      %426 = sbr.rel (0) target = $region69
    $region68: #{tpu_custom_call.1} parent=1 // pred_region
      %s428 = ssub.s32 128, 128
      %429 = vsyncadd [#allocation13], %s428
      %s431 = sshll.u32 [#allocation12], 4
      %s432 = int_to_ptr.vmem [resolvable:$true] %s431
      %434 = dma.vmem_to_hbm [thread:$0]  %s432, 128, %s11, [#allocation13]
    $region69: #{tpu_custom_call.1} parent=1 // pred_fallthru
      _
    // Predicated region
    $region70: #{tpu_custom_call.1} parent=1 // pred_check
      _
    $region71: #{tpu_custom_call.1} parent=1 // pred_check_branch
      %436 = sbr.rel (0) target = $region73
    $region72: #{tpu_custom_call.1} parent=1 // pred_region
      %437 = dma.done [#allocation4], 128
    $region73: #{tpu_custom_call.1} parent=1 // pred_fallthru
      _
    // Predicated region
    $region74: #{tpu_custom_call.1} parent=1 // pred_check
      _
    $region75: #{tpu_custom_call.1} parent=1 // pred_check_branch
      %439 = sbr.rel (0) target = $region77
    $region76: #{tpu_custom_call.1} parent=1 // pred_region
      %440 = dma.done [#allocation13], 128
    $region77: #{tpu_custom_call.1} parent=1 // pred_fallthru
      _
    %441 = vsyncpa [#allocation3], 1
    %442 = vsyncpa [#allocation6], 1
    %443 = vsyncpa [#allocation9], 1
    %444 = vsyncpa [#allocation4], 1
    %445 = vsyncpa [#allocation13], 1

</llo_original>
